<compile_context>
chip_gen: v7x
topology: tpu7x:2x2x1
jax: 0.10.0
libtpu: 0.0.40
codegen_flags: <defaults>
</compile_context>

<pallas_src>
import jax
import jax.numpy as jnp
from jax import lax
from jax.experimental import pallas as pl
from jax.experimental.pallas import tpu as pltpu


# ---------------------------------------------------------------------------
# helpers
# ---------------------------------------------------------------------------
def _fold_bn(layer, eps=1e-5):
    """Fold inference BatchNorm into the 1x1 conv: W' = diag(s)W, b' = beta - mean*s."""
    w, gamma, beta, mean, var = layer
    s = gamma / jnp.sqrt(var + eps)
    return w * s[:, None], beta - mean * s


def _pick_tile(p, cap=1024, min_tiles=1):
    """Largest multiple of 128 <= cap that divides p and yields >= min_tiles tiles."""
    best, t = 128, 128
    while t <= min(cap, p):
        if p % t == 0 and (p // t) >= min_tiles:
            best = t
        t += 128
    return best


def _vmem_limit_bytes():
    """3/4 of physical VMEM, capped at 64 MiB (-> 48 MiB on v7x, 64 MiB on v5e/v6e)."""
    try:
        cap = int(pltpu.get_tpu_info().vmem_capacity_bytes)
    except Exception:
        cap = 64 * 1024 * 1024
    return min((cap * 3) // 4, 64 * 1024 * 1024)


def _resident_spec(arr):
    """Whole-array block with a constant index_map (stays resident in VMEM)."""
    return pl.BlockSpec(tuple(arr.shape), lambda b, t: (0,) * arr.ndim)


# ---------------------------------------------------------------------------
# fused kernel: f_pixel + f_object + f_down + softmax attention + f_up
# ---------------------------------------------------------------------------
def _fused_ocr_kernel(wp1_ref, bp1_ref, wp2_ref, bp2_ref,      # f_pixel (2 layers)
                      wo1_ref, bo1_ref, wo2_ref, bo2_ref,      # f_object (2 layers)
                      wd1_ref, bd1_ref,                        # f_down (1 layer)
                      wu_ref, bu_ref,                          # f_up (1 layer)
                      x_ref, pxy_ref, o_ref):
    cdt = wp1_ref.dtype                      # bf16 compute dtype for the MXU

    def cbr(h, pairs):
        # 1x1 conv (BN scale already folded into the weight) + bias + ReLU.
        # MXU with f32 accumulation; activations go back to bf16 between layers.
        for w_ref, b_ref in pairs:
            h = jnp.dot(w_ref[...], h, preferred_element_type=jnp.float32)
            h = jnp.maximum(h + b_ref[...], 0.0).astype(cdt)
        return h

    xp = pxy_ref[0]                                                   # (C, PK)
    q = cbr(x_ref[0], ((wp1_ref, bp1_ref), (wp2_ref, bp2_ref)))       # (Kc, TQ)
    k = cbr(xp, ((wo1_ref, bo1_ref), (wo2_ref, bo2_ref)))             # (Kc, PK)
    v = cbr(xp, ((wd1_ref, bd1_ref),))                                # (Kc, PK)

    # sim_t[p, t] = sum_c k[c, p] * q[c, t]   (Kc**-0.5 already folded into q)
    # Transposed (PK, TQ) layout: lane-dense on the large spatial axis.
    sim_t = lax.dot_general(k, q, (((0,), (0,)), ((), ())),
                            preferred_element_type=jnp.float32)       # (PK, TQ)

    # numerically stable softmax over the (small) proxy axis
    m = jnp.max(sim_t, axis=0, keepdims=True)                         # (1, TQ)
    e = jnp.exp(sim_t - m)                                            # (PK, TQ)
    denom = jnp.sum(e, axis=0, keepdims=True)                         # (1, TQ)
    p_t = (e * pl.reciprocal(denom, approx=True)).astype(cdt)         # (PK, TQ)

    # ctx[c, t] = sum_p v[c, p] * p_t[p, t]   -- canonical (Kc,PK)x(PK,TQ)
    ctx = jnp.dot(v, p_t, preferred_element_type=jnp.float32)         # (Kc, TQ)

    # fused f_up: 1x1 conv + folded BN + ReLU, emitted straight to the out tile
    out = jnp.dot(wu_ref[...], ctx.astype(cdt),
                  preferred_element_type=jnp.float32)                 # (Co, TQ)
    o_ref[0] = jnp.maximum(out + bu_ref[...], 0.0).astype(o_ref.dtype)


# ---------------------------------------------------------------------------
# full ObjectAttentionBlock forward
# ---------------------------------------------------------------------------
def object_attention_block(x, proxy, params, key_channels, scale=1,
                           compute_dtype=jnp.bfloat16):
    """x: (N, C, H, W), proxy: (N, C, Hp, Wp) -> (N, C, H, W)."""
    n, c, h, w = x.shape
    out_dtype = x.dtype
    if scale > 1:
        # MaxPool2d(scale) downsample — plain-JAX glue, only runs for scale > 1.
        x = lax.reduce_window(x, -jnp.inf, lax.max,
                              (1, 1, scale, scale), (1, 1, scale, scale), "VALID")
    hq, wq = x.shape[2], x.shape[3]
    hw = hq * wq
    pk = proxy.shape[2] * proxy.shape[3]

    # ---- fold BN into the conv weights; fold the softmax scale into the last
    # ---- f_pixel layer (exact: a positive scale commutes with ReLU)
    (wp1, bp1), (wp2, bp2) = [_fold_bn(l) for l in params["f_pixel"]]
    (wo1, bo1), (wo2, bo2) = [_fold_bn(l) for l in params["f_object"]]
    (wd1, bd1), = [_fold_bn(l) for l in params["f_down"]]
    (wu, bu), = [_fold_bn(l) for l in params["f_up"]]
    sm_scale = float(key_channels) ** (-0.5)
    wp2 = wp2 * sm_scale
    bp2 = bp2 * sm_scale

    kc = wp1.shape[0]
    c_out = wu.shape[0]

    def as_w(a):                       # MXU operands in bf16
        return a.astype(compute_dtype)

    def as_b(a):                       # biases stay f32, (Co, 1) for broadcast
        return a.reshape(-1, 1).astype(jnp.float32)

    weights = [as_w(wp1), as_b(bp1), as_w(wp2), as_b(bp2),
               as_w(wo1), as_b(bo1), as_w(wo2), as_b(bo2),
               as_w(wd1), as_b(bd1), as_w(wu), as_b(bu)]

    # ---- native (N, C, P) layout, spatial axis padded to a multiple of 128 ----
    hw_pad = 128 * pl.cdiv(hw, 128)
    xf = x.reshape(n, c, hw).astype(compute_dtype)
    if hw_pad != hw:
        xf = jnp.pad(xf, ((0, 0), (0, 0), (0, hw_pad - hw)))
    pf = proxy.reshape(n, c, pk).astype(compute_dtype)

    # >= 2 spatial tiles when N == 1 so both v7x TensorCores get work.
    tq = _pick_tile(hw_pad, cap=1024, min_tiles=2 if n == 1 else 1)
    grid = (n, hw_pad // tq)

    itemsize_in = jnp.dtype(compute_dtype).itemsize
    itemsize_out = jnp.dtype(out_dtype).itemsize
    w_bytes = sum(int(a.size) * jnp.dtype(a.dtype).itemsize for a in weights)
    macs_per_col = kc * (c + kc) + 2 * kc * pk + c_out * kc
    kv_macs = n * grid[1] * pk * kc * (2 * c + kc)        # k/v recompute per tile
    cost = pl.CostEstimate(
        flops=2 * (n * hw_pad * macs_per_col + kv_macs),
        transcendentals=n * hw_pad * pk,
        bytes_accessed=(n * c * hw_pad * itemsize_in
                        + n * c_out * hw_pad * itemsize_out
                        + n * c * pk * itemsize_in + w_bytes),
    )

    out = pl.pallas_call(
        _fused_ocr_kernel,
        out_shape=jax.ShapeDtypeStruct((n, c_out, hw_pad), out_dtype),
        grid_spec=pltpu.PrefetchScalarGridSpec(
            num_scalar_prefetch=0,
            grid=grid,
            in_specs=[_resident_spec(a) for a in weights] + [
                pl.BlockSpec((1, c, tq), lambda b, t: (b, 0, t)),   # x tile
                pl.BlockSpec((1, c, pk), lambda b, t: (b, 0, 0)),   # proxy (resident per batch)
            ],
            out_specs=pl.BlockSpec((1, c_out, tq), lambda b, t: (b, 0, t)),
        ),
        compiler_params=pltpu.CompilerParams(
            dimension_semantics=("parallel", "parallel"),
            vmem_limit_bytes=_vmem_limit_bytes(),
        ),
        cost_estimate=cost,
    )(*weights, xf, pf)

    out = out[:, :, :hw].reshape(n, c_out, hq, wq)
    if scale > 1:
        # F.interpolate(mode='bilinear', align_corners=False) -> half-pixel resize.
        # TODO(synk): scale>1 path not exercised at scale=1; validate parity if used.
        out = jax.image.resize(out, (n, c_out, h, w), method="bilinear")
    return out


# ---------------------------------------------------------------------------
# plain-JAX f32 reference (mirrors the PyTorch forward, BN in inference form)
# ---------------------------------------------------------------------------
def _ref_cbr(x_flat, layers, eps=1e-5):
    h = x_flat
    for (w, gamma, beta, mean, var) in layers:
        h = jnp.einsum("oi,niP->noP", w, h)
        inv = gamma / jnp.sqrt(var + eps)
        h = h * inv[None, :, None] + (beta - mean * inv)[None, :, None]
        h = jnp.maximum(h, 0.0)
    return h


def object_attention_ref(x, proxy, params, key_channels):
    n, c, h, w = x.shape
    hw = h * w
    hwp = proxy.shape[2] * proxy.shape[3]
    xf = x.reshape(n, c, hw)
    pf = proxy.reshape(n, c, hwp)
    query = _ref_cbr(xf, params["f_pixel"])
    key_ = _ref_cbr(pf, params["f_object"])
    value = _ref_cbr(pf, params["f_down"])
    sim = jnp.einsum("nkq,nkp->nqp", query, key_) * (key_channels ** (-0.5))
    sim = jax.nn.softmax(sim, axis=-1)
    ctx = jnp.einsum("nqp,nkp->nkq", sim, value)
    out = _ref_cbr(ctx, params["f_up"])
    return out.reshape(n, -1, h, w)


# ---------------------------------------------------------------------------
# test driver
# ---------------------------------------------------------------------------
def _make_cbr_params(key, cin, cout):
    kw, kg, kb, km, kv = jax.random.split(key, 5)
    w = jax.random.normal(kw, (cout, cin), jnp.float32) / jnp.sqrt(float(cin))
    gamma = 1.0 + 0.1 * jax.random.normal(kg, (cout,), jnp.float32)
    beta = 0.1 * jax.random.normal(kb, (cout,), jnp.float32)
    mean = 0.1 * jax.random.normal(km, (cout,), jnp.float32)
    var = 1.0 + 0.1 * jax.random.uniform(kv, (cout,), jnp.float32)
    return (w, gamma, beta, mean, var)


if __name__ == "__main__":
    key = jax.random.PRNGKey(0)
    kx, kp, k1, k2, k3, k4, k5, k6 = jax.random.split(key, 8)

    N, C, KC, H, W = 2, 8, 16, 16, 16   # batch, in_channels, key_channels, spatial
    KOBJ = 4                            # proxy object regions: proxy is (N, C, K, 1)

    x = jax.random.normal(kx, (N, C, H, W), dtype=jnp.float32)
    proxy = jax.random.normal(kp, (N, C, KOBJ, 1), dtype=jnp.float32)

    params = {
        "f_pixel": [_make_cbr_params(k1, C, KC), _make_cbr_params(k2, KC, KC)],
        "f_object": [_make_cbr_params(k3, C, KC), _make_cbr_params(k4, KC, KC)],
        "f_down": [_make_cbr_params(k5, C, KC)],
        "f_up": [_make_cbr_params(k6, KC, C)],
    }

    out = object_attention_block(x, proxy, params, KC, scale=1)
    out = jax.block_until_ready(out)

    ref = object_attention_ref(x, proxy, params, KC)
    assert out.shape == (N, C, H, W), out.shape
    # The kernel feeds the MXU in bf16 (f32 accumulation) and uses the EUP approx
    # reciprocal in the softmax (per the perf guidance), so allow bf16-level
    # deviation (~1% relative) from the pure-f32 reference, with margin.
    assert jnp.allclose(out, ref, atol=5e-2, rtol=5e-2), "mismatch vs reference"

    print("KERNEL_OK")
</pallas_src>

<mosaic_0001>
module attributes {stable_mosaic.version = 11 : i64} {
  func.func @_fused_ocr_kernel(%arg0: i32, %arg1: i32, %arg2: memref<16x8xbf16, #tpu.memory_space<vmem>>, %arg3: memref<16x1xf32, #tpu.memory_space<vmem>>, %arg4: memref<16x16xbf16, #tpu.memory_space<vmem>>, %arg5: memref<16x1xf32, #tpu.memory_space<vmem>>, %arg6: memref<16x8xbf16, #tpu.memory_space<vmem>>, %arg7: memref<16x1xf32, #tpu.memory_space<vmem>>, %arg8: memref<16x16xbf16, #tpu.memory_space<vmem>>, %arg9: memref<16x1xf32, #tpu.memory_space<vmem>>, %arg10: memref<16x8xbf16, #tpu.memory_space<vmem>>, %arg11: memref<16x1xf32, #tpu.memory_space<vmem>>, %arg12: memref<8x16xbf16, #tpu.memory_space<vmem>>, %arg13: memref<8x1xf32, #tpu.memory_space<vmem>>, %arg14: memref<1x8x256xbf16, #tpu.memory_space<vmem>>, %arg15: memref<1x8x4xbf16, #tpu.memory_space<vmem>>, %arg16: memref<1x8x256xf32, #tpu.memory_space<vmem>>) attributes {dimension_semantics = [#tpu.dimension_semantics<parallel>, #tpu.dimension_semantics<parallel>], iteration_bounds = array<i64: 2, 1>, scalar_prefetch = 0 : i64, scratch_operands = 0 : i64, tpu.core_type = #tpu.core_type<tc>, window_params = [{pipeline_mode = #tpu.pipeline_mode<synchronous>, transform_indices = @transform_0, window_bounds = array<i64: 16, 8>}, {pipeline_mode = #tpu.pipeline_mode<synchronous>, transform_indices = @transform_1, window_bounds = array<i64: 16, 1>}, {pipeline_mode = #tpu.pipeline_mode<synchronous>, transform_indices = @transform_2, window_bounds = array<i64: 16, 16>}, {pipeline_mode = #tpu.pipeline_mode<synchronous>, transform_indices = @transform_3, window_bounds = array<i64: 16, 1>}, {pipeline_mode = #tpu.pipeline_mode<synchronous>, transform_indices = @transform_4, window_bounds = array<i64: 16, 8>}, {pipeline_mode = #tpu.pipeline_mode<synchronous>, transform_indices = @transform_5, window_bounds = array<i64: 16, 1>}, {pipeline_mode = #tpu.pipeline_mode<synchronous>, transform_indices = @transform_6, window_bounds = array<i64: 16, 16>}, {pipeline_mode = #tpu.pipeline_mode<synchronous>, transform_indices = @transform_7, window_bounds = array<i64: 16, 1>}, {pipeline_mode = #tpu.pipeline_mode<synchronous>, transform_indices = @transform_8, window_bounds = array<i64: 16, 8>}, {pipeline_mode = #tpu.pipeline_mode<synchronous>, transform_indices = @transform_9, window_bounds = array<i64: 16, 1>}, {pipeline_mode = #tpu.pipeline_mode<synchronous>, transform_indices = @transform_10, window_bounds = array<i64: 8, 16>}, {pipeline_mode = #tpu.pipeline_mode<synchronous>, transform_indices = @transform_11, window_bounds = array<i64: 8, 1>}, {transform_indices = @transform_12, window_bounds = array<i64: 1, 8, 256>}, {transform_indices = @transform_13, window_bounds = array<i64: 1, 8, 4>}, {transform_indices = @transform_14, window_bounds = array<i64: 1, 8, 256>}]} {
    %c0 = arith.constant 0 : index
    %c0_0 = arith.constant 0 : index
    %c0_1 = arith.constant 0 : index
    %0 = vector.load %arg15[%c0, %c0_0, %c0_1] : memref<1x8x4xbf16, #tpu.memory_space<vmem>>, vector<1x8x4xbf16>
    %1 = vector.shape_cast %0 : vector<1x8x4xbf16> to vector<8x4xbf16>
    %c0_2 = arith.constant 0 : index
    %c0_3 = arith.constant 0 : index
    %c0_4 = arith.constant 0 : index
    %2 = vector.load %arg14[%c0_2, %c0_3, %c0_4] : memref<1x8x256xbf16, #tpu.memory_space<vmem>>, vector<1x8x256xbf16>
    %3 = vector.shape_cast %2 : vector<1x8x256xbf16> to vector<8x256xbf16>
    %c0_5 = arith.constant 0 : index
    %c0_6 = arith.constant 0 : index
    %4 = vector.load %arg2[%c0_5, %c0_6] : memref<16x8xbf16, #tpu.memory_space<vmem>>, vector<16x8xbf16>
    %cst = arith.constant dense<0.000000e+00> : vector<16x256xf32>
    %5 = tpu.matmul %4, %3, %cst {dimension_numbers = #tpu.dot_dimension_numbers<[1], [0], [0], [1], [0, 0, 1, 1], [], []>} : vector<16x8xbf16>, vector<8x256xbf16>, vector<16x256xf32> -> vector<16x256xf32>
    %c0_7 = arith.constant 0 : index
    %c0_8 = arith.constant 0 : index
    %6 = vector.load %arg3[%c0_7, %c0_8] : memref<16x1xf32, #tpu.memory_space<vmem>>, vector<16x1xf32>
    %7 = vector.broadcast %6 : vector<16x1xf32> to vector<16x256xf32>
    %8 = arith.addf %5, %7 : vector<16x256xf32>
    %cst_9 = arith.constant 0.000000e+00 : f32
    %9 = vector.broadcast %cst_9 : f32 to vector<16x256xf32>
    %10 = arith.maximumf %8, %9 : vector<16x256xf32>
    %11 = arith.truncf %10 : vector<16x256xf32> to vector<16x256xbf16>
    %c0_10 = arith.constant 0 : index
    %c0_11 = arith.constant 0 : index
    %12 = vector.load %arg4[%c0_10, %c0_11] : memref<16x16xbf16, #tpu.memory_space<vmem>>, vector<16x16xbf16>
    %cst_12 = arith.constant dense<0.000000e+00> : vector<16x256xf32>
    %13 = tpu.matmul %12, %11, %cst_12 {dimension_numbers = #tpu.dot_dimension_numbers<[1], [0], [0], [1], [0, 0, 1, 1], [], []>} : vector<16x16xbf16>, vector<16x256xbf16>, vector<16x256xf32> -> vector<16x256xf32>
    %c0_13 = arith.constant 0 : index
    %c0_14 = arith.constant 0 : index
    %14 = vector.load %arg5[%c0_13, %c0_14] : memref<16x1xf32, #tpu.memory_space<vmem>>, vector<16x1xf32>
    %15 = vector.broadcast %14 : vector<16x1xf32> to vector<16x256xf32>
    %16 = arith.addf %13, %15 : vector<16x256xf32>
    %cst_15 = arith.constant 0.000000e+00 : f32
    %17 = vector.broadcast %cst_15 : f32 to vector<16x256xf32>
    %18 = arith.maximumf %16, %17 : vector<16x256xf32>
    %19 = arith.truncf %18 : vector<16x256xf32> to vector<16x256xbf16>
    %c0_16 = arith.constant 0 : index
    %c0_17 = arith.constant 0 : index
    %20 = vector.load %arg6[%c0_16, %c0_17] : memref<16x8xbf16, #tpu.memory_space<vmem>>, vector<16x8xbf16>
    %cst_18 = arith.constant dense<0.000000e+00> : vector<16x4xf32>
    %21 = tpu.matmul %20, %1, %cst_18 {dimension_numbers = #tpu.dot_dimension_numbers<[1], [0], [0], [1], [0, 0, 1, 1], [], []>} : vector<16x8xbf16>, vector<8x4xbf16>, vector<16x4xf32> -> vector<16x4xf32>
    %c0_19 = arith.constant 0 : index
    %c0_20 = arith.constant 0 : index
    %22 = vector.load %arg7[%c0_19, %c0_20] : memref<16x1xf32, #tpu.memory_space<vmem>>, vector<16x1xf32>
    %23 = vector.broadcast %22 : vector<16x1xf32> to vector<16x4xf32>
    %24 = arith.addf %21, %23 : vector<16x4xf32>
    %cst_21 = arith.constant 0.000000e+00 : f32
    %25 = vector.broadcast %cst_21 : f32 to vector<16x4xf32>
    %26 = arith.maximumf %24, %25 : vector<16x4xf32>
    %27 = arith.truncf %26 : vector<16x4xf32> to vector<16x4xbf16>
    %c0_22 = arith.constant 0 : index
    %c0_23 = arith.constant 0 : index
    %28 = vector.load %arg8[%c0_22, %c0_23] : memref<16x16xbf16, #tpu.memory_space<vmem>>, vector<16x16xbf16>
    %cst_24 = arith.constant dense<0.000000e+00> : vector<16x4xf32>
    %29 = tpu.matmul %28, %27, %cst_24 {dimension_numbers = #tpu.dot_dimension_numbers<[1], [0], [0], [1], [0, 0, 1, 1], [], []>} : vector<16x16xbf16>, vector<16x4xbf16>, vector<16x4xf32> -> vector<16x4xf32>
    %c0_25 = arith.constant 0 : index
    %c0_26 = arith.constant 0 : index
    %30 = vector.load %arg9[%c0_25, %c0_26] : memref<16x1xf32, #tpu.memory_space<vmem>>, vector<16x1xf32>
    %31 = vector.broadcast %30 : vector<16x1xf32> to vector<16x4xf32>
    %32 = arith.addf %29, %31 : vector<16x4xf32>
    %cst_27 = arith.constant 0.000000e+00 : f32
    %33 = vector.broadcast %cst_27 : f32 to vector<16x4xf32>
    %34 = arith.maximumf %32, %33 : vector<16x4xf32>
    %35 = arith.truncf %34 : vector<16x4xf32> to vector<16x4xbf16>
    %c0_28 = arith.constant 0 : index
    %c0_29 = arith.constant 0 : index
    %36 = vector.load %arg10[%c0_28, %c0_29] : memref<16x8xbf16, #tpu.memory_space<vmem>>, vector<16x8xbf16>
    %cst_30 = arith.constant dense<0.000000e+00> : vector<16x4xf32>
    %37 = tpu.matmul %36, %1, %cst_30 {dimension_numbers = #tpu.dot_dimension_numbers<[1], [0], [0], [1], [0, 0, 1, 1], [], []>} : vector<16x8xbf16>, vector<8x4xbf16>, vector<16x4xf32> -> vector<16x4xf32>
    %c0_31 = arith.constant 0 : index
    %c0_32 = arith.constant 0 : index
    %38 = vector.load %arg11[%c0_31, %c0_32] : memref<16x1xf32, #tpu.memory_space<vmem>>, vector<16x1xf32>
    %39 = vector.broadcast %38 : vector<16x1xf32> to vector<16x4xf32>
    %40 = arith.addf %37, %39 : vector<16x4xf32>
    %cst_33 = arith.constant 0.000000e+00 : f32
    %41 = vector.broadcast %cst_33 : f32 to vector<16x4xf32>
    %42 = arith.maximumf %40, %41 : vector<16x4xf32>
    %43 = arith.truncf %42 : vector<16x4xf32> to vector<16x4xbf16>
    %cst_34 = arith.constant dense<0.000000e+00> : vector<4x256xf32>
    %44 = tpu.matmul %35, %19, %cst_34 {dimension_numbers = #tpu.dot_dimension_numbers<[0], [0], [1], [1], [0, 1, 1, 1], [], []>} : vector<16x4xbf16>, vector<16x256xbf16>, vector<4x256xf32> -> vector<4x256xf32>
    %cst_35 = arith.constant dense<0xFF800000> : vector<256xf32>
    %45 = vector.multi_reduction <maximumf>, %44, %cst_35 [0] : vector<4x256xf32> to vector<256xf32>
    %46 = vector.shape_cast %45 : vector<256xf32> to vector<1x256xf32>
    %47 = vector.broadcast %46 : vector<1x256xf32> to vector<4x256xf32>
    %48 = arith.subf %44, %47 : vector<4x256xf32>
    %49 = math.exp %48 : vector<4x256xf32>
    %cst_36 = arith.constant dense<0.000000e+00> : vector<256xf32>
    %50 = vector.multi_reduction <add>, %49, %cst_36 [0] : vector<4x256xf32> to vector<256xf32>
    %51 = vector.shape_cast %50 : vector<256xf32> to vector<1x256xf32>
    %52 = tpu.reciprocal %51 {approx = true} : vector<1x256xf32> -> vector<1x256xf32>
    %53 = vector.broadcast %52 : vector<1x256xf32> to vector<4x256xf32>
    %54 = arith.mulf %49, %53 : vector<4x256xf32>
    %55 = arith.truncf %54 : vector<4x256xf32> to vector<4x256xbf16>
    %cst_37 = arith.constant dense<0.000000e+00> : vector<16x256xf32>
    %56 = tpu.matmul %43, %55, %cst_37 {dimension_numbers = #tpu.dot_dimension_numbers<[1], [0], [0], [1], [0, 0, 1, 1], [], []>} : vector<16x4xbf16>, vector<4x256xbf16>, vector<16x256xf32> -> vector<16x256xf32>
    %c0_38 = arith.constant 0 : index
    %c0_39 = arith.constant 0 : index
    %57 = vector.load %arg12[%c0_38, %c0_39] : memref<8x16xbf16, #tpu.memory_space<vmem>>, vector<8x16xbf16>
    %58 = arith.truncf %56 : vector<16x256xf32> to vector<16x256xbf16>
    %cst_40 = arith.constant dense<0.000000e+00> : vector<8x256xf32>
    %59 = tpu.matmul %57, %58, %cst_40 {dimension_numbers = #tpu.dot_dimension_numbers<[1], [0], [0], [1], [0, 0, 1, 1], [], []>} : vector<8x16xbf16>, vector<16x256xbf16>, vector<8x256xf32> -> vector<8x256xf32>
    %c0_41 = arith.constant 0 : index
    %c0_42 = arith.constant 0 : index
    %60 = vector.load %arg13[%c0_41, %c0_42] : memref<8x1xf32, #tpu.memory_space<vmem>>, vector<8x1xf32>
    %61 = vector.broadcast %60 : vector<8x1xf32> to vector<8x256xf32>
    %62 = arith.addf %59, %61 : vector<8x256xf32>
    %cst_43 = arith.constant 0.000000e+00 : f32
    %63 = vector.broadcast %cst_43 : f32 to vector<8x256xf32>
    %64 = arith.maximumf %62, %63 : vector<8x256xf32>
    %c0_44 = arith.constant 0 : index
    %c0_45 = arith.constant 0 : index
    %c0_46 = arith.constant 0 : index
    %65 = vector.load %arg16[%c0_44, %c0_45, %c0_46] : memref<1x8x256xf32, #tpu.memory_space<vmem>>, vector<1x8x256xf32>
    %66 = vector.shape_cast %65 : vector<1x8x256xf32> to vector<8x256xf32>
    %67 = vector.shape_cast %64 : vector<8x256xf32> to vector<1x8x256xf32>
    tpu.vector_store %arg16[%c0_44, %c0_45, %c0_46], %67 {strides = array<i32>} : memref<1x8x256xf32, #tpu.memory_space<vmem>>, vector<1x8x256xf32>,
    return
  }
  func.func @transform_0(%arg0: i32, %arg1: i32) -> (i32, i32) {
    %c0_i32 = arith.constant 0 : i32
    %c0_i32_0 = arith.constant 0 : i32
    %c0_i32_1 = arith.constant 0 : i32
    return %c0_i32, %c0_i32_0 : i32, i32
  }
  func.func @transform_1(%arg0: i32, %arg1: i32) -> (i32, i32) {
    %c0_i32 = arith.constant 0 : i32
    %c0_i32_0 = arith.constant 0 : i32
    %c0_i32_1 = arith.constant 0 : i32
    return %c0_i32, %c0_i32_0 : i32, i32
  }
  func.func @transform_2(%arg0: i32, %arg1: i32) -> (i32, i32) {
    %c0_i32 = arith.constant 0 : i32
    %c0_i32_0 = arith.constant 0 : i32
    %c0_i32_1 = arith.constant 0 : i32
    return %c0_i32, %c0_i32_0 : i32, i32
  }
  func.func @transform_3(%arg0: i32, %arg1: i32) -> (i32, i32) {
    %c0_i32 = arith.constant 0 : i32
    %c0_i32_0 = arith.constant 0 : i32
    %c0_i32_1 = arith.constant 0 : i32
    return %c0_i32, %c0_i32_0 : i32, i32
  }
  func.func @transform_4(%arg0: i32, %arg1: i32) -> (i32, i32) {
    %c0_i32 = arith.constant 0 : i32
    %c0_i32_0 = arith.constant 0 : i32
    %c0_i32_1 = arith.constant 0 : i32
    return %c0_i32, %c0_i32_0 : i32, i32
  }
  func.func @transform_5(%arg0: i32, %arg1: i32) -> (i32, i32) {
    %c0_i32 = arith.constant 0 : i32
    %c0_i32_0 = arith.constant 0 : i32
    %c0_i32_1 = arith.constant 0 : i32
    return %c0_i32, %c0_i32_0 : i32, i32
  }
  func.func @transform_6(%arg0: i32, %arg1: i32) -> (i32, i32) {
    %c0_i32 = arith.constant 0 : i32
    %c0_i32_0 = arith.constant 0 : i32
    %c0_i32_1 = arith.constant 0 : i32
    return %c0_i32, %c0_i32_0 : i32, i32
  }
  func.func @transform_7(%arg0: i32, %arg1: i32) -> (i32, i32) {
    %c0_i32 = arith.constant 0 : i32
    %c0_i32_0 = arith.constant 0 : i32
    %c0_i32_1 = arith.constant 0 : i32
    return %c0_i32, %c0_i32_0 : i32, i32
  }
  func.func @transform_8(%arg0: i32, %arg1: i32) -> (i32, i32) {
    %c0_i32 = arith.constant 0 : i32
    %c0_i32_0 = arith.constant 0 : i32
    %c0_i32_1 = arith.constant 0 : i32
    return %c0_i32, %c0_i32_0 : i32, i32
  }
  func.func @transform_9(%arg0: i32, %arg1: i32) -> (i32, i32) {
    %c0_i32 = arith.constant 0 : i32
    %c0_i32_0 = arith.constant 0 : i32
    %c0_i32_1 = arith.constant 0 : i32
    return %c0_i32, %c0_i32_0 : i32, i32
  }
  func.func @transform_10(%arg0: i32, %arg1: i32) -> (i32, i32) {
    %c0_i32 = arith.constant 0 : i32
    %c0_i32_0 = arith.constant 0 : i32
    %c0_i32_1 = arith.constant 0 : i32
    return %c0_i32, %c0_i32_0 : i32, i32
  }
  func.func @transform_11(%arg0: i32, %arg1: i32) -> (i32, i32) {
    %c0_i32 = arith.constant 0 : i32
    %c0_i32_0 = arith.constant 0 : i32
    %c0_i32_1 = arith.constant 0 : i32
    return %c0_i32, %c0_i32_0 : i32, i32
  }
  func.func @transform_12(%arg0: i32, %arg1: i32) -> (i32, i32, i32) {
    %c0_i32 = arith.constant 0 : i32
    %c0_i32_0 = arith.constant 0 : i32
    return %arg0, %c0_i32, %arg1 : i32, i32, i32
  }
  func.func @transform_13(%arg0: i32, %arg1: i32) -> (i32, i32, i32) {
    %c0_i32 = arith.constant 0 : i32
    %c0_i32_0 = arith.constant 0 : i32
    %c0_i32_1 = arith.constant 0 : i32
    return %arg0, %c0_i32, %c0_i32_0 : i32, i32, i32
  }
  func.func @transform_14(%arg0: i32, %arg1: i32) -> (i32, i32, i32) {
    %c0_i32 = arith.constant 0 : i32
    %c0_i32_0 = arith.constant 0 : i32
    return %arg0, %c0_i32, %arg1 : i32, i32, i32
  }
}

</mosaic_0001>

<llo_original>
// kernel: tpu_custom_call.1
$region0: #{tpu_custom_call.1}
  #allocation0 [shape = 'u32[]', space=smem, size = 0x4, offset = 0x4, fixed_abs, tag = 'smem constant byte address 0x4 - core index']
  #allocation1 [shape = 'u32[144,128]{1,0:T(1,128)}', space=vmem, size = 0x12000, scoped, tag = 'internal scratch']
  %s0 = inlined_call_operand.vmem [shape: bf16[16,8], index: 0, kind: input, shape index: {}]
  %s1 = inlined_call_operand.vmem [shape: f32[16,1], index: 1, kind: input, shape index: {}]
  %s2 = inlined_call_operand.vmem [shape: bf16[16,16], index: 2, kind: input, shape index: {}]
  %s3 = inlined_call_operand.vmem [shape: f32[16,1], index: 3, kind: input, shape index: {}]
  %s4 = inlined_call_operand.vmem [shape: bf16[16,8], index: 4, kind: input, shape index: {}]
  %s5 = inlined_call_operand.vmem [shape: f32[16,1], index: 5, kind: input, shape index: {}]
  %s6 = inlined_call_operand.vmem [shape: bf16[16,16], index: 6, kind: input, shape index: {}]
  %s7 = inlined_call_operand.vmem [shape: f32[16,1], index: 7, kind: input, shape index: {}]
  %s8 = inlined_call_operand.vmem [shape: bf16[16,8], index: 8, kind: input, shape index: {}]
  %s9 = inlined_call_operand.vmem [shape: f32[16,1], index: 9, kind: input, shape index: {}]
  %s10 = inlined_call_operand.vmem [shape: bf16[8,16], index: 10, kind: input, shape index: {}]
  %s11 = inlined_call_operand.vmem [shape: f32[8,1], index: 11, kind: input, shape index: {}]
  %s12 = inlined_call_operand.vmem [shape: bf16[2,8,256], index: 12, kind: input, shape index: {}]
  %s13 = inlined_call_operand.vmem [shape: bf16[2,8,4], index: 13, kind: input, shape index: {}]
  %s14 = inlined_call_operand.hbm [shape: f32[2,8,256], index: 14, kind: output, shape index: {}]
  %s15 = sld [smem:[#allocation0]]
  $region89: #{tpu_custom_call.1} parent=0
    _
  %s17 = ssub.s32 1, %s15
  %s18 = scalar_select 0, %s17, %s15
  $region1: #{tpu_custom_call.1} parent=0
    #allocation2 [shape = 'u8[16384]{0}', space=vmem, size = 0x4000, scoped, tag = 'output window, operand 0']
    #allocation3 [shape = 's32[2]{0}', space=sflag, size = 0x8, scoped, tag = 'scoped memory for tpu_custom_call.1']
    %19 = vsyncpa [#allocation3], 0
    %s20 = scalar_lea.sflag [#allocation3], 1
    %21 = vsyncpa %s20, 0
    loop: start=0, step=1, limit=4
    $region2: #{tpu_custom_call.1} parent=1 // loop_pre_header
      _
    $region3: #{tpu_custom_call.1} parent=1 // loop_header
      %s23 = sphi 0, %s27
      %p24 = scmp.ge.s32.totalorder %s23, 4
      %s30 = sphi 0, %s42
      %s31 = sphi 0, %s38
      %s32 = sphi 0, %s30
      %s33 = sphi 0, %s31
      %s34 = sphi 0, %s32
      %s35 = sphi 0, %s33
      %s43 = sphi 0, %s43
      %s45 = sphi 0, %s43
      %s46 = sphi 0, %s45
      %s60 = sphi 0, %s46
      %s64 = sphi 0, %s64
      %s66 = sphi 0, %s64
      %s67 = sphi 0, %s66
      %s81 = sphi 0, %s67
      %s85 = sphi 0, %s85
      %s87 = sphi 0, %s85
      %s88 = sphi 0, %s87
      %s102 = sphi 0, %s88
      %s106 = sphi 0, %s106
      %s108 = sphi 0, %s106
      %s109 = sphi 0, %s108
      %s123 = sphi 0, %s109
      %s127 = sphi 0, %s127
      %s129 = sphi 0, %s127
      %s130 = sphi 0, %s129
      %s144 = sphi 0, %s130
      %s148 = sphi 0, %s148
      %s150 = sphi 0, %s148
      %s151 = sphi 0, %s150
      %s165 = sphi 0, %s151
      %s169 = sphi 0, %s169
      %s171 = sphi 0, %s169
      %s172 = sphi 0, %s171
      %s186 = sphi 0, %s172
      %s190 = sphi 0, %s190
      %s192 = sphi 0, %s190
      %s193 = sphi 0, %s192
      %s207 = sphi 0, %s193
      %s211 = sphi 0, %s211
      %s213 = sphi 0, %s211
      %s214 = sphi 0, %s213
      %s228 = sphi 0, %s214
      %s232 = sphi 0, %s232
      %s234 = sphi 0, %s232
      %s235 = sphi 0, %s234
      %s249 = sphi 0, %s235
      %s253 = sphi 0, %s253
      %s255 = sphi 0, %s253
      %s256 = sphi 0, %s255
      %s270 = sphi 0, %s256
      %s274 = sphi 0, %s274
      %s276 = sphi 0, %s274
      %s277 = sphi 0, %s276
      %s291 = sphi 0, %s277
      %s299 = sphi 0, %s301
      %s302 = sphi 0, %s299
      %s303 = sphi 0, %s302
      %s319 = sphi 0, %s303
      %s325 = sphi 0, %s327
      %s328 = sphi 0, %s325
      %s329 = sphi 0, %s328
      %s345 = sphi 0, %s329
      %s353 = sphi 0, %s355
      %s356 = sphi 0, %s353
      %s357 = sphi 0, %s356
      %s373 = sphi 0, %s357
    $region4: #{tpu_custom_call.1} parent=1 // loop_header_branch
      %26 = sbr.rel (%p24) target = $region8
    $region5: #{tpu_custom_call.1} parent=1 // loop_body
      %s28 = ssub.s32 %s23, 1
      %s29 = ssub.s32 %s23, 2
      %s36 = sadd.s32 1, %s31
      %p37 = scmp.ge.s32.totalorder %s36, 1
      %s38 = scalar_select %p37, 0, %s36
      %s39 = sadd.s32 1, %s30
      %s40 = scalar_select %p37, %s39, %s30
      %p41 = scmp.ge.s32.totalorder %s40, 2
      %s42 = scalar_select %p41, 0, %s40
      %s44 = sadd.s32 %s43, 1
      %p47 = scmp.eq.s32.totalorder %s23, 1
      %p48 = scmp.ne.s32.totalorder %s43, %s45
      %p49 = scmp.eq.s32.totalorder %s23, 0
      %p50 = por %p48, %p49
      %p51 = scmp.ne.s32.totalorder %s43, %s45
      %p52 = scmp.eq.s32.totalorder %s28, 1
      %p53 = por %p51, %p52
      %p54 = scmp.ne.s32.totalorder %s45, %s46
      %p55 = scmp.eq.s32.totalorder %s28, 0
      %p56 = por %p54, %p55
      %p57 = scmp.ne.s32.totalorder %s45, %s46
      %p58 = scmp.eq.s32.totalorder %s29, 1
      %p59 = por %p57, %p58
      %p61 = scmp.ne.s32.totalorder %s46, %s60
      %p62 = scmp.eq.s32.totalorder %s29, 0
      %p63 = por %p61, %p62
      %s65 = sadd.s32 %s64, 1
      %p68 = scmp.eq.s32.totalorder %s23, 1
      %p69 = scmp.ne.s32.totalorder %s64, %s66
      %p70 = scmp.eq.s32.totalorder %s23, 0
      %p71 = por %p69, %p70
      %p72 = scmp.ne.s32.totalorder %s64, %s66
      %p73 = scmp.eq.s32.totalorder %s28, 1
      %p74 = por %p72, %p73
      %p75 = scmp.ne.s32.totalorder %s66, %s67
      %p76 = scmp.eq.s32.totalorder %s28, 0
      %p77 = por %p75, %p76
      %p78 = scmp.ne.s32.totalorder %s66, %s67
      %p79 = scmp.eq.s32.totalorder %s29, 1
      %p80 = por %p78, %p79
      %p82 = scmp.ne.s32.totalorder %s67, %s81
      %p83 = scmp.eq.s32.totalorder %s29, 0
      %p84 = por %p82, %p83
      %s86 = sadd.s32 %s85, 1
      %p89 = scmp.eq.s32.totalorder %s23, 1
      %p90 = scmp.ne.s32.totalorder %s85, %s87
      %p91 = scmp.eq.s32.totalorder %s23, 0
      %p92 = por %p90, %p91
      %p93 = scmp.ne.s32.totalorder %s85, %s87
      %p94 = scmp.eq.s32.totalorder %s28, 1
      %p95 = por %p93, %p94
      %p96 = scmp.ne.s32.totalorder %s87, %s88
      %p97 = scmp.eq.s32.totalorder %s28, 0
      %p98 = por %p96, %p97
      %p99 = scmp.ne.s32.totalorder %s87, %s88
      %p100 = scmp.eq.s32.totalorder %s29, 1
      %p101 = por %p99, %p100
      %p103 = scmp.ne.s32.totalorder %s88, %s102
      %p104 = scmp.eq.s32.totalorder %s29, 0
      %p105 = por %p103, %p104
      %s107 = sadd.s32 %s106, 1
      %p110 = scmp.eq.s32.totalorder %s23, 1
      %p111 = scmp.ne.s32.totalorder %s106, %s108
      %p112 = scmp.eq.s32.totalorder %s23, 0
      %p113 = por %p111, %p112
      %p114 = scmp.ne.s32.totalorder %s106, %s108
      %p115 = scmp.eq.s32.totalorder %s28, 1
      %p116 = por %p114, %p115
      %p117 = scmp.ne.s32.totalorder %s108, %s109
      %p118 = scmp.eq.s32.totalorder %s28, 0
      %p119 = por %p117, %p118
      %p120 = scmp.ne.s32.totalorder %s108, %s109
      %p121 = scmp.eq.s32.totalorder %s29, 1
      %p122 = por %p120, %p121
      %p124 = scmp.ne.s32.totalorder %s109, %s123
      %p125 = scmp.eq.s32.totalorder %s29, 0
      %p126 = por %p124, %p125
      %s128 = sadd.s32 %s127, 1
      %p131 = scmp.eq.s32.totalorder %s23, 1
      %p132 = scmp.ne.s32.totalorder %s127, %s129
      %p133 = scmp.eq.s32.totalorder %s23, 0
      %p134 = por %p132, %p133
      %p135 = scmp.ne.s32.totalorder %s127, %s129
      %p136 = scmp.eq.s32.totalorder %s28, 1
      %p137 = por %p135, %p136
      %p138 = scmp.ne.s32.totalorder %s129, %s130
      %p139 = scmp.eq.s32.totalorder %s28, 0
      %p140 = por %p138, %p139
      %p141 = scmp.ne.s32.totalorder %s129, %s130
      %p142 = scmp.eq.s32.totalorder %s29, 1
      %p143 = por %p141, %p142
      %p145 = scmp.ne.s32.totalorder %s130, %s144
      %p146 = scmp.eq.s32.totalorder %s29, 0
      %p147 = por %p145, %p146
      %s149 = sadd.s32 %s148, 1
      %p152 = scmp.eq.s32.totalorder %s23, 1
      %p153 = scmp.ne.s32.totalorder %s148, %s150
      %p154 = scmp.eq.s32.totalorder %s23, 0
      %p155 = por %p153, %p154
      %p156 = scmp.ne.s32.totalorder %s148, %s150
      %p157 = scmp.eq.s32.totalorder %s28, 1
      %p158 = por %p156, %p157
      %p159 = scmp.ne.s32.totalorder %s150, %s151
      %p160 = scmp.eq.s32.totalorder %s28, 0
      %p161 = por %p159, %p160
      %p162 = scmp.ne.s32.totalorder %s150, %s151
      %p163 = scmp.eq.s32.totalorder %s29, 1
      %p164 = por %p162, %p163
      %p166 = scmp.ne.s32.totalorder %s151, %s165
      %p167 = scmp.eq.s32.totalorder %s29, 0
      %p168 = por %p166, %p167
      %s170 = sadd.s32 %s169, 1
      %p173 = scmp.eq.s32.totalorder %s23, 1
      %p174 = scmp.ne.s32.totalorder %s169, %s171
      %p175 = scmp.eq.s32.totalorder %s23, 0
      %p176 = por %p174, %p175
      %p177 = scmp.ne.s32.totalorder %s169, %s171
      %p178 = scmp.eq.s32.totalorder %s28, 1
      %p179 = por %p177, %p178
      %p180 = scmp.ne.s32.totalorder %s171, %s172
      %p181 = scmp.eq.s32.totalorder %s28, 0
      %p182 = por %p180, %p181
      %p183 = scmp.ne.s32.totalorder %s171, %s172
      %p184 = scmp.eq.s32.totalorder %s29, 1
      %p185 = por %p183, %p184
      %p187 = scmp.ne.s32.totalorder %s172, %s186
      %p188 = scmp.eq.s32.totalorder %s29, 0
      %p189 = por %p187, %p188
      %s191 = sadd.s32 %s190, 1
      %p194 = scmp.eq.s32.totalorder %s23, 1
      %p195 = scmp.ne.s32.totalorder %s190, %s192
      %p196 = scmp.eq.s32.totalorder %s23, 0
      %p197 = por %p195, %p196
      %p198 = scmp.ne.s32.totalorder %s190, %s192
      %p199 = scmp.eq.s32.totalorder %s28, 1
      %p200 = por %p198, %p199
      %p201 = scmp.ne.s32.totalorder %s192, %s193
      %p202 = scmp.eq.s32.totalorder %s28, 0
      %p203 = por %p201, %p202
      %p204 = scmp.ne.s32.totalorder %s192, %s193
      %p205 = scmp.eq.s32.totalorder %s29, 1
      %p206 = por %p204, %p205
      %p208 = scmp.ne.s32.totalorder %s193, %s207
      %p209 = scmp.eq.s32.totalorder %s29, 0
      %p210 = por %p208, %p209
      %s212 = sadd.s32 %s211, 1
      %p215 = scmp.eq.s32.totalorder %s23, 1
      %p216 = scmp.ne.s32.totalorder %s211, %s213
      %p217 = scmp.eq.s32.totalorder %s23, 0
      %p218 = por %p216, %p217
      %p219 = scmp.ne.s32.totalorder %s211, %s213
      %p220 = scmp.eq.s32.totalorder %s28, 1
      %p221 = por %p219, %p220
      %p222 = scmp.ne.s32.totalorder %s213, %s214
      %p223 = scmp.eq.s32.totalorder %s28, 0
      %p224 = por %p222, %p223
      %p225 = scmp.ne.s32.totalorder %s213, %s214
      %p226 = scmp.eq.s32.totalorder %s29, 1
      %p227 = por %p225, %p226
      %p229 = scmp.ne.s32.totalorder %s214, %s228
      %p230 = scmp.eq.s32.totalorder %s29, 0
      %p231 = por %p229, %p230
      %s233 = sadd.s32 %s232, 1
      %p236 = scmp.eq.s32.totalorder %s23, 1
      %p237 = scmp.ne.s32.totalorder %s232, %s234
      %p238 = scmp.eq.s32.totalorder %s23, 0
      %p239 = por %p237, %p238
      %p240 = scmp.ne.s32.totalorder %s232, %s234
      %p241 = scmp.eq.s32.totalorder %s28, 1
      %p242 = por %p240, %p241
      %p243 = scmp.ne.s32.totalorder %s234, %s235
      %p244 = scmp.eq.s32.totalorder %s28, 0
      %p245 = por %p243, %p244
      %p246 = scmp.ne.s32.totalorder %s234, %s235
      %p247 = scmp.eq.s32.totalorder %s29, 1
      %p248 = por %p246, %p247
      %p250 = scmp.ne.s32.totalorder %s235, %s249
      %p251 = scmp.eq.s32.totalorder %s29, 0
      %p252 = por %p250, %p251
      %s254 = sadd.s32 %s253, 1
      %p257 = scmp.eq.s32.totalorder %s23, 1
      %p258 = scmp.ne.s32.totalorder %s253, %s255
      %p259 = scmp.eq.s32.totalorder %s23, 0
      %p260 = por %p258, %p259
      %p261 = scmp.ne.s32.totalorder %s253, %s255
      %p262 = scmp.eq.s32.totalorder %s28, 1
      %p263 = por %p261, %p262
      %p264 = scmp.ne.s32.totalorder %s255, %s256
      %p265 = scmp.eq.s32.totalorder %s28, 0
      %p266 = por %p264, %p265
      %p267 = scmp.ne.s32.totalorder %s255, %s256
      %p268 = scmp.eq.s32.totalorder %s29, 1
      %p269 = por %p267, %p268
      %p271 = scmp.ne.s32.totalorder %s256, %s270
      %p272 = scmp.eq.s32.totalorder %s29, 0
      %p273 = por %p271, %p272
      %s275 = sadd.s32 %s274, 1
      %p278 = scmp.eq.s32.totalorder %s23, 1
      %p279 = scmp.ne.s32.totalorder %s274, %s276
      %p280 = scmp.eq.s32.totalorder %s23, 0
      %p281 = por %p279, %p280
      %p282 = scmp.ne.s32.totalorder %s274, %s276
      %p283 = scmp.eq.s32.totalorder %s28, 1
      %p284 = por %p282, %p283
      %p285 = scmp.ne.s32.totalorder %s276, %s277
      %p286 = scmp.eq.s32.totalorder %s28, 0
      %p287 = por %p285, %p286
      %p288 = scmp.ne.s32.totalorder %s276, %s277
      %p289 = scmp.eq.s32.totalorder %s29, 1
      %p290 = por %p288, %p289
      %p292 = scmp.ne.s32.totalorder %s277, %s291
      %p293 = scmp.eq.s32.totalorder %s29, 0
      %p294 = por %p292, %p293
      %s295 = ssub.s32 %s30, %s42
      %s296 = ssub.s32 %s31, %s38
      %s297 = sor.u32 %s295, %s296
      %p298 = scmp.eq.s32.totalorder %s297, 0
      %s300 = sadd.s32 %s299, 1
      %s301 = scalar_select %p298, %s299, %s300
      %p304 = pneg %p298
      %p305 = scmp.eq.s32.totalorder %s23, 1
      %p306 = por %p304, %p305
      %p307 = scmp.ne.s32.totalorder %s299, %s302
      %p308 = scmp.eq.s32.totalorder %s23, 0
      %p309 = por %p307, %p308
      %p310 = scmp.ne.s32.totalorder %s299, %s302
      %p311 = scmp.eq.s32.totalorder %s28, 1
      %p312 = por %p310, %p311
      %p313 = scmp.ne.s32.totalorder %s302, %s303
      %p314 = scmp.eq.s32.totalorder %s28, 0
      %p315 = por %p313, %p314
      %p316 = scmp.ne.s32.totalorder %s302, %s303
      %p317 = scmp.eq.s32.totalorder %s29, 1
      %p318 = por %p316, %p317
      %p320 = scmp.ne.s32.totalorder %s303, %s319
      %p321 = scmp.eq.s32.totalorder %s29, 0
      %p322 = por %p320, %p321
      %s323 = ssub.s32 %s30, %s42
      %p324 = scmp.eq.s32.totalorder %s323, 0
      %s326 = sadd.s32 %s325, 1
      %s327 = scalar_select %p324, %s325, %s326
      %p330 = pneg %p324
      %p331 = scmp.eq.s32.totalorder %s23, 1
      %p332 = por %p330, %p331
      %p333 = scmp.ne.s32.totalorder %s325, %s328
      %p334 = scmp.eq.s32.totalorder %s23, 0
      %p335 = por %p333, %p334
      %p336 = scmp.ne.s32.totalorder %s325, %s328
      %p337 = scmp.eq.s32.totalorder %s28, 1
      %p338 = por %p336, %p337
      %p339 = scmp.ne.s32.totalorder %s328, %s329
      %p340 = scmp.eq.s32.totalorder %s28, 0
      %p341 = por %p339, %p340
      %p342 = scmp.ne.s32.totalorder %s328, %s329
      %p343 = scmp.eq.s32.totalorder %s29, 1
      %p344 = por %p342, %p343
      %p346 = scmp.ne.s32.totalorder %s329, %s345
      %p347 = scmp.eq.s32.totalorder %s29, 0
      %p348 = por %p346, %p347
      %s349 = ssub.s32 %s30, %s42
      %s350 = ssub.s32 %s31, %s38
      %s351 = sor.u32 %s349, %s350
      %p352 = scmp.eq.s32.totalorder %s351, 0
      %s354 = sadd.s32 %s353, 1
      %s355 = scalar_select %p352, %s353, %s354
      %p358 = pneg %p352
      %p359 = scmp.eq.s32.totalorder %s23, 1
      %p360 = por %p358, %p359
      %p361 = scmp.ne.s32.totalorder %s353, %s356
      %p362 = scmp.eq.s32.totalorder %s23, 0
      %p363 = por %p361, %p362
      %p364 = scmp.ne.s32.totalorder %s353, %s356
      %p365 = scmp.eq.s32.totalorder %s28, 1
      %p366 = por %p364, %p365
      %p367 = scmp.ne.s32.totalorder %s356, %s357
      %p368 = scmp.eq.s32.totalorder %s28, 0
      %p369 = por %p367, %p368
      %p370 = scmp.ne.s32.totalorder %s356, %s357
      %p371 = scmp.eq.s32.totalorder %s29, 1
      %p372 = por %p370, %p371
      %p374 = scmp.ne.s32.totalorder %s357, %s373
      %p375 = scmp.eq.s32.totalorder %s29, 0
      %p376 = por %p374, %p375
      %p377 = scmp.le.s32.totalorder 1, %s23
      %p378 = scmp.lt.s32.totalorder %s23, 3
      %p379 = pnand %p377, %p378
      %p380 = pneg %p379
      // Predicated region
      $region9: #{tpu_custom_call.1} parent=5 // pred_check
        _
      $region10: #{tpu_custom_call.1} parent=5 // pred_check_branch
        %382 = sbr.rel (%p379) target = $region12
      $region11: #{tpu_custom_call.1} parent=5 // pred_region
        %s383 = ssub.s32 %s23, 1
        // Predicated region
        $region13: #{tpu_custom_call.1} parent=11 // pred_check
          %p384 = pneg %p56
        $region14: #{tpu_custom_call.1} parent=11 // pred_check_branch
          %386 = sbr.rel (%p384) target = $region16
        $region15: #{tpu_custom_call.1} parent=11 // pred_region
          _
        $region16: #{tpu_custom_call.1} parent=11 // pred_fallthru
          _
        // Predicated region
        $region17: #{tpu_custom_call.1} parent=11 // pred_check
          %p387 = pneg %p77
        $region18: #{tpu_custom_call.1} parent=11 // pred_check_branch
          %389 = sbr.rel (%p387) target = $region20
        $region19: #{tpu_custom_call.1} parent=11 // pred_region
          _
        $region20: #{tpu_custom_call.1} parent=11 // pred_fallthru
          _
        // Predicated region
        $region21: #{tpu_custom_call.1} parent=11 // pred_check
          %p390 = pneg %p98
        $region22: #{tpu_custom_call.1} parent=11 // pred_check_branch
          %392 = sbr.rel (%p390) target = $region24
        $region23: #{tpu_custom_call.1} parent=11 // pred_region
          _
        $region24: #{tpu_custom_call.1} parent=11 // pred_fallthru
          _
        // Predicated region
        $region25: #{tpu_custom_call.1} parent=11 // pred_check
          %p393 = pneg %p119
        $region26: #{tpu_custom_call.1} parent=11 // pred_check_branch
          %395 = sbr.rel (%p393) target = $region28
        $region27: #{tpu_custom_call.1} parent=11 // pred_region
          _
        $region28: #{tpu_custom_call.1} parent=11 // pred_fallthru
          _
        // Predicated region
        $region29: #{tpu_custom_call.1} parent=11 // pred_check
          %p396 = pneg %p140
        $region30: #{tpu_custom_call.1} parent=11 // pred_check_branch
          %398 = sbr.rel (%p396) target = $region32
        $region31: #{tpu_custom_call.1} parent=11 // pred_region
          _
        $region32: #{tpu_custom_call.1} parent=11 // pred_fallthru
          _
        // Predicated region
        $region33: #{tpu_custom_call.1} parent=11 // pred_check
          %p399 = pneg %p161
        $region34: #{tpu_custom_call.1} parent=11 // pred_check_branch
          %401 = sbr.rel (%p399) target = $region36
        $region35: #{tpu_custom_call.1} parent=11 // pred_region
          _
        $region36: #{tpu_custom_call.1} parent=11 // pred_fallthru
          _
        // Predicated region
        $region37: #{tpu_custom_call.1} parent=11 // pred_check
          %p402 = pneg %p182
        $region38: #{tpu_custom_call.1} parent=11 // pred_check_branch
          %404 = sbr.rel (%p402) target = $region40
        $region39: #{tpu_custom_call.1} parent=11 // pred_region
          _
        $region40: #{tpu_custom_call.1} parent=11 // pred_fallthru
          _
        // Predicated region
        $region41: #{tpu_custom_call.1} parent=11 // pred_check
          %p405 = pneg %p203
        $region42: #{tpu_custom_call.1} parent=11 // pred_check_branch
          %407 = sbr.rel (%p405) target = $region44
        $region43: #{tpu_custom_call.1} parent=11 // pred_region
          _
        $region44: #{tpu_custom_call.1} parent=11 // pred_fallthru
          _
        // Predicated region
        $region45: #{tpu_custom_call.1} parent=11 // pred_check
          %p408 = pneg %p224
        $region46: #{tpu_custom_call.1} parent=11 // pred_check_branch
          %410 = sbr.rel (%p408) target = $region48
        $region47: #{tpu_custom_call.1} parent=11 // pred_region
          _
        $region48: #{tpu_custom_call.1} parent=11 // pred_fallthru
          _
        // Predicated region
        $region49: #{tpu_custom_call.1} parent=11 // pred_check
          %p411 = pneg %p245
        $region50: #{tpu_custom_call.1} parent=11 // pred_check_branch
          %413 = sbr.rel (%p411) target = $region52
        $region51: #{tpu_custom_call.1} parent=11 // pred_region
          _
        $region52: #{tpu_custom_call.1} parent=11 // pred_fallthru
          _
        // Predicated region
        $region53: #{tpu_custom_call.1} parent=11 // pred_check
          %p414 = pneg %p266
        $region54: #{tpu_custom_call.1} parent=11 // pred_check_branch
          %416 = sbr.rel (%p414) target = $region56
        $region55: #{tpu_custom_call.1} parent=11 // pred_region
          _
        $region56: #{tpu_custom_call.1} parent=11 // pred_fallthru
          _
        // Predicated region
        $region57: #{tpu_custom_call.1} parent=11 // pred_check
          %p417 = pneg %p287
        $region58: #{tpu_custom_call.1} parent=11 // pred_check_branch
          %419 = sbr.rel (%p417) target = $region60
        $region59: #{tpu_custom_call.1} parent=11 // pred_region
          _
        $region60: #{tpu_custom_call.1} parent=11 // pred_fallthru
          _
      $region12: #{tpu_custom_call.1} parent=5 // pred_fallthru
        _
      %p420 = scmp.lt.s32.totalorder %s23, 2
      // Predicated region
      $region61: #{tpu_custom_call.1} parent=5 // pred_check
        %p421 = pneg %p420
      $region62: #{tpu_custom_call.1} parent=5 // pred_check_branch
        %423 = sbr.rel (%p421) target = $region64
      $region63: #{tpu_custom_call.1} parent=5 // pred_region
        // Predicated region
        $region65: #{tpu_custom_call.1} parent=63 // pred_check
          %p424 = pneg %p309
        $region66: #{tpu_custom_call.1} parent=63 // pred_check_branch
          %426 = sbr.rel (%p424) target = $region68
        $region67: #{tpu_custom_call.1} parent=63 // pred_region
          %s427 = smul.u32 2, %s31
          %p428 = scmp.lt.s32.totalorder %s30, 1
          %s429 = scalar_select %p428, %s30, 1
          %p430 = scmp.lt.s32.totalorder %s427, 1
          %s431 = scalar_select %p430, %s427, 1
          %s432 = smul.addr %s429, 2
          %s433 = sadd.s32 %s431, %s432
          %s434 = smul.addr %s433, 4
          %s435 = scalar_lea.vmem %s12, %s434
          %s436 = smul.u32 2, %s31
        $region68: #{tpu_custom_call.1} parent=63 // pred_fallthru
          _
        // Predicated region
        $region69: #{tpu_custom_call.1} parent=63 // pred_check
          %p437 = pneg %p335
        $region70: #{tpu_custom_call.1} parent=63 // pred_check_branch
          %439 = sbr.rel (%p437) target = $region72
        $region71: #{tpu_custom_call.1} parent=63 // pred_region
          %p440 = scmp.lt.s32.totalorder %s30, 1
          %s441 = scalar_select %p440, %s30, 1
          %s442 = smul.addr %s441, 4
          %s443 = scalar_lea.vmem %s13, %s442
        $region72: #{tpu_custom_call.1} parent=63 // pred_fallthru
          _
      $region64: #{tpu_custom_call.1} parent=5 // pred_fallthru
        _
      %p444 = scmp.le.s32.totalorder 1, %s23
      %p445 = scmp.lt.s32.totalorder %s23, 3
      %p446 = pnand %p444, %p445
      %p447 = pneg %p446
      // Predicated region
      $region73: #{tpu_custom_call.1} parent=5 // pred_check
        _
      $region74: #{tpu_custom_call.1} parent=5 // pred_check_branch
        %449 = sbr.rel (%p446) target = $region76
      $region75: #{tpu_custom_call.1} parent=5 // pred_region
        %s450 = ssub.s32 %s23, 1
        %p451 = pneg %p56
        %p452 = pneg %p53
        %p453 = pneg %p77
        %p454 = pneg %p74
        %p455 = pneg %p98
        %p456 = pneg %p95
        %p457 = pneg %p119
        %p458 = pneg %p116
        %p459 = pneg %p140
        %p460 = pneg %p137
        %p461 = pneg %p161
        %p462 = pneg %p158
        %p463 = pneg %p182
        %p464 = pneg %p179
        %p465 = pneg %p203
        %p466 = pneg %p200
        %p467 = pneg %p224
        %p468 = pneg %p221
        %p469 = pneg %p245
        %p470 = pneg %p242
        %p471 = pneg %p266
        %p472 = pneg %p263
        %p473 = pneg %p287
        %p474 = pneg %p284
        %s475 = smul.u32 2, %s33
        %p476 = scmp.lt.s32.totalorder %s32, 1
        %s477 = scalar_select %p476, %s32, 1
        %p478 = scmp.lt.s32.totalorder %s475, 1
        %s479 = scalar_select %p478, %s475, 1
        %s480 = smul.addr %s477, 2
        %s481 = sadd.s32 %s479, %s480
        %s482 = smul.addr %s481, 4
        %s483 = scalar_lea.vmem %s12, %s482
        %p484 = pneg %p315
        %p485 = pneg %p312
        %p486 = scmp.lt.s32.totalorder %s32, 1
        %s487 = scalar_select %p486, %s32, 1
        %s488 = smul.addr %s487, 4
        %s489 = scalar_lea.vmem %s13, %s488
        %p490 = pneg %p341
        %p491 = pneg %p338
        %p492 = pneg %p369
        %p493 = pneg %p366
        %s494 = sand.u32 %s356, 1
        %s495 = scalar_lea.sflag [#allocation3], %s494
        %s496 = sand.u32 %s356, 1
        %s497 = smul.addr %s496, 16
        %s498 = scalar_lea.vmem [#allocation2], %s497
        %s499 = smul.u32 2, %s33
        %p500 = scmp.lt.s32.totalorder %s32, 1
        %s501 = scalar_select %p500, %s32, 1
        %p502 = scmp.lt.s32.totalorder %s499, 1
        %s503 = scalar_select %p502, %s499, 1
        %s504 = smul.addr %s501, 2
        %s505 = sadd.s32 %s503, %s504
        %s506 = smul.addr %s505, 4
        %s507 = scalar_lea.vmem %s12, %s506
        %s508 = smul.u32 2, %s33
        %p509 = scmp.lt.s32.totalorder %s32, 1
        %s510 = scalar_select %p509, %s32, 1
        %s511 = smul.addr %s510, 4
        %s512 = scalar_lea.vmem %s13, %s511
        %s513 = smul.u32 2, %s33
        %v515 = vld [vmem:[%s512] sm:$0xf]
        %v516 = vld [vmem:[%s507] sm:$0xff]
        %v517 = vld [vmem:[%s0] sm:$0xf]
        %v518 = vld [vmem:[%s0 + $0x4] sm:$0xf]
        %v519 = vld [vmem:[%s1] sm:$0xff]
        %v520 = vld [vmem:[%s1 + $0x8] sm:$0xff]
        %522 = vset.pattern.permute.xlu0 0
        %523 = vperm.xlu0 %522, %v519
        %v524 = vpop.permute.xlu0 %523
        %527 = vset.pattern.permute.xlu0 0
        %528 = vperm.xlu0 %527, %v520
        %v529 = vpop.permute.xlu0 %528
        %v533 = vunpack.c.l.b16 %v517
        %v534 = vunpack.c.l.b16 %v518
        %v535 = vpack.c.b16 %v534, %v533
        %v537 = vunpack.c.l.b16 %v516
        %v538 = vunpack.c.h.b16 %v516
        %v539 = vpack.c.b16 %v537, %v537
        %v540 = vpack.c.b16 %v538, %v538
        %vm541 = vcmask 64512
        %v543 = vsel %vm541, %v535, 0
        %vm545 = vcmask 1043456
        %v547 = vsel %vm545, %v539, 0
        %v550 = vsel %vm545, %v540, 0
        %552 = vmatprep.subr.bf16.mxu0 %v550
        %553 = vmatpush1.bf16.msra.mxu0 %v547
        %554 = vmatprep.subr.bf16.mxu0 0
        %555 = vmatpush1.bf16.msra.mxu0 0
        %556 = vmatprep.subr.bf16.mxu0 0
        %557 = vmatpush1.bf16.msra.mxu0 0
        %558 = vmatprep.subr.bf16.mxu0 0
        %559 = vmatpush1.bf16.msra.mxu0 0
        %560 = vmatprep.subr.bf16.mxu0 0
        %561 = vmatpush1.bf16.msra.mxu0 0
        %562 = vmatprep.subr.bf16.mxu0 0
        %563 = vmatpush1.bf16.msra.mxu0 0
        %564 = vmatprep.subr.bf16.mxu0 0
        %565 = vmatpush1.bf16.msra.mxu0 0
        %566 = vmatprep.subr.bf16.mxu0 0
        %567 = vmatpush1.bf16.msra.mxu0 0
        %568 = vmatprep.subr.bf16.mxu0 0
        %569 = vmatpush1.bf16.msra.mxu0 0
        %570 = vmatprep.subr.bf16.mxu0 0
        %571 = vmatpush1.bf16.msra.mxu0 0
        %572 = vmatprep.subr.bf16.mxu0 0
        %573 = vmatpush1.bf16.msra.mxu0 0
        %574 = vmatprep.subr.bf16.mxu0 0
        %575 = vmatpush1.bf16.msra.mxu0 0
        %576 = vmatprep.subr.bf16.mxu0 0
        %577 = vmatpush1.bf16.msra.mxu0 0
        %578 = vmatprep.subr.bf16.mxu0 0
        %579 = vmatpush1.bf16.msra.mxu0 0
        %580 = vmatprep.subr.bf16.mxu0 0
        %581 = vmatpush1.bf16.msra.mxu0 0
        %582 = vmatprep.subr.bf16.mxu0 0
        %583 = vmatpush1.bf16.msra.mxu0 0
        %584 = vmatprep.mubr.bf16.mxu0 0
        %585 = vmatmul.mubr.bf16.gmra.mrb[0].mxu0 %v543
        %v586 = vpop.f32.mrb[0].mxu0
        %v587 = vadd.f32 %v524, %v586
        %v588 = vpop.f32.mrb[0].mxu0
        %v589 = vadd.f32 %v524, %v588
        %v590 = vpop.f32.mrb[0].mxu0
        %v591 = vadd.f32 %v529, %v590
        %v592 = vpop.f32.mrb[0].mxu0
        %v593 = vadd.f32 %v529, %v592
        %594 = vdwg.mxu0
        %v595 = vmax.f32 %v587, 0.0
        %v596 = vmax.f32 %v589, 0.0
        %v597 = vmax.f32 %v591, 0.0
        %v598 = vmax.f32 %v593, 0.0
        %v599 = vpack.c.bf16 %v597, %v595
        %v600 = vpack.c.bf16 %v598, %v596
        %v601 = vld [vmem:[%s2] sm:$0xf]
        %v602 = vld [vmem:[%s2 + $0x4] sm:$0xf]
        %v603 = vld [vmem:[%s3] sm:$0xff]
        %v604 = vld [vmem:[%s3 + $0x8] sm:$0xff]
        %606 = vset.pattern.permute.xlu0 0
        %607 = vperm.xlu0 %606, %v603
        %v608 = vpop.permute.xlu0 %607
        %611 = vset.pattern.permute.xlu0 0
        %612 = vperm.xlu0 %611, %v604
        %v613 = vpop.permute.xlu0 %612
        %v617 = vunpack.c.l.b16 %v601
        %v618 = vunpack.c.l.b16 %v602
        %v619 = vpack.c.b16 %v618, %v617
        %vm620 = vcmask 130048
        %v622 = vsel %vm620, %v619, 0
        %624 = vmatprep.subr.bf16.mxu0 %v600
        %625 = vmatpush1.bf16.msra.mxu0 %v599
        %626 = vmatprep.subr.bf16.mxu0 0
        %627 = vmatpush1.bf16.msra.mxu0 0
        %628 = vmatprep.subr.bf16.mxu0 0
        %629 = vmatpush1.bf16.msra.mxu0 0
        %630 = vmatprep.subr.bf16.mxu0 0
        %631 = vmatpush1.bf16.msra.mxu0 0
        %632 = vmatprep.subr.bf16.mxu0 0
        %633 = vmatpush1.bf16.msra.mxu0 0
        %634 = vmatprep.subr.bf16.mxu0 0
        %635 = vmatpush1.bf16.msra.mxu0 0
        %636 = vmatprep.subr.bf16.mxu0 0
        %637 = vmatpush1.bf16.msra.mxu0 0
        %638 = vmatprep.subr.bf16.mxu0 0
        %639 = vmatpush1.bf16.msra.mxu0 0
        %640 = vmatprep.subr.bf16.mxu0 0
        %641 = vmatpush1.bf16.msra.mxu0 0
        %642 = vmatprep.subr.bf16.mxu0 0
        %643 = vmatpush1.bf16.msra.mxu0 0
        %644 = vmatprep.subr.bf16.mxu0 0
        %645 = vmatpush1.bf16.msra.mxu0 0
        %646 = vmatprep.subr.bf16.mxu0 0
        %647 = vmatpush1.bf16.msra.mxu0 0
        %648 = vmatprep.subr.bf16.mxu0 0
        %649 = vmatpush1.bf16.msra.mxu0 0
        %650 = vmatprep.subr.bf16.mxu0 0
        %651 = vmatpush1.bf16.msra.mxu0 0
        %652 = vmatprep.subr.bf16.mxu0 0
        %653 = vmatpush1.bf16.msra.mxu0 0
        %654 = vmatprep.subr.bf16.mxu0 0
        %655 = vmatpush1.bf16.msra.mxu0 0
        %656 = vmatprep.mubr.bf16.mxu0 0
        %657 = vmatmul.mubr.bf16.gmra.mrb[0].mxu0 %v622
        %v658 = vpop.f32.mrb[0].mxu0
        %v659 = vadd.f32 %v608, %v658
        %v660 = vpop.f32.mrb[0].mxu0
        %v661 = vadd.f32 %v608, %v660
        %v662 = vpop.f32.mrb[0].mxu0
        %v663 = vadd.f32 %v613, %v662
        %v664 = vpop.f32.mrb[0].mxu0
        %v665 = vadd.f32 %v613, %v664
        %666 = vdwg.mxu0
        %v667 = vmax.f32 %v659, 0.0
        %v668 = vmax.f32 %v661, 0.0
        %v669 = vmax.f32 %v663, 0.0
        %v670 = vmax.f32 %v665, 0.0
        %v671 = vpack.c.bf16 %v669, %v667
        %v672 = vpack.c.bf16 %v670, %v668
        %v673 = vld [vmem:[%s4] sm:$0xf]
        %v674 = vld [vmem:[%s4 + $0x4] sm:$0xf]
        %v675 = vld [vmem:[%s5] sm:$0xff]
        %v676 = vld [vmem:[%s5 + $0x8] sm:$0xff]
        %678 = vset.pattern.permute.xlu0 0
        %679 = vperm.xlu0 %678, %v675
        %v680 = vpop.permute.xlu0 %679
        %683 = vset.pattern.permute.xlu0 0
        %684 = vperm.xlu0 %683, %v676
        %v685 = vpop.permute.xlu0 %684
        %v689 = vunpack.c.l.b16 %v673
        %v690 = vunpack.c.l.b16 %v674
        %v691 = vpack.c.b16 %v690, %v689
        %v693 = vsel %vm541, %v691, 0
        %v696 = vsel %vm545, %v515, 0
        %698 = vmatprep.subr.bf16.mxu0 0
        %699 = vmatpush1.bf16.msra.mxu0 %v696
        %700 = vmatprep.subr.bf16.mxu0 0
        %701 = vmatpush1.bf16.msra.mxu0 0
        %702 = vmatprep.subr.bf16.mxu0 0
        %703 = vmatpush1.bf16.msra.mxu0 0
        %704 = vmatprep.subr.bf16.mxu0 0
        %705 = vmatpush1.bf16.msra.mxu0 0
        %706 = vmatprep.subr.bf16.mxu0 0
        %707 = vmatpush1.bf16.msra.mxu0 0
        %708 = vmatprep.subr.bf16.mxu0 0
        %709 = vmatpush1.bf16.msra.mxu0 0
        %710 = vmatprep.subr.bf16.mxu0 0
        %711 = vmatpush1.bf16.msra.mxu0 0
        %712 = vmatprep.subr.bf16.mxu0 0
        %713 = vmatpush1.bf16.msra.mxu0 0
        %714 = vmatprep.subr.bf16.mxu0 0
        %715 = vmatpush1.bf16.msra.mxu0 0
        %716 = vmatprep.subr.bf16.mxu0 0
        %717 = vmatpush1.bf16.msra.mxu0 0
        %718 = vmatprep.subr.bf16.mxu0 0
        %719 = vmatpush1.bf16.msra.mxu0 0
        %720 = vmatprep.subr.bf16.mxu0 0
        %721 = vmatpush1.bf16.msra.mxu0 0
        %722 = vmatprep.subr.bf16.mxu0 0
        %723 = vmatpush1.bf16.msra.mxu0 0
        %724 = vmatprep.subr.bf16.mxu0 0
        %725 = vmatpush1.bf16.msra.mxu0 0
        %726 = vmatprep.subr.bf16.mxu0 0
        %727 = vmatpush1.bf16.msra.mxu0 0
        %728 = vmatprep.subr.bf16.mxu0 0
        %729 = vmatpush1.bf16.msra.mxu0 0
        %730 = vmatprep.mubr.bf16.mxu0 0
        %731 = vmatmul.mubr.bf16.gmra.mrb[0].mxu0 %v693
        %v732 = vpop.f32.mrb[0].mxu0
        %v733 = vadd.f32 %v680, %v732
        %v734 = vpop.f32.mrb[0].mxu0
        %v735 = vpop.f32.mrb[0].mxu0
        %v736 = vadd.f32 %v685, %v735
        %v737 = vpop.f32.mrb[0].mxu0
        %738 = vdwg.mxu0
        %v739 = vmax.f32 %v733, 0.0
        %v740 = vmax.f32 %v736, 0.0
        %v741 = vpack.c.bf16 %v740, %v739
        %v742 = vld [vmem:[%s6] sm:$0xf]
        %v743 = vld [vmem:[%s6 + $0x4] sm:$0xf]
        %v744 = vld [vmem:[%s7] sm:$0xff]
        %v745 = vld [vmem:[%s7 + $0x8] sm:$0xff]
        %747 = vset.pattern.permute.xlu0 0
        %748 = vperm.xlu0 %747, %v744
        %v749 = vpop.permute.xlu0 %748
        %752 = vset.pattern.permute.xlu0 0
        %753 = vperm.xlu0 %752, %v745
        %v754 = vpop.permute.xlu0 %753
        %v758 = vunpack.c.l.b16 %v742
        %v759 = vunpack.c.l.b16 %v743
        %v760 = vpack.c.b16 %v759, %v758
        %v762 = vsel %vm620, %v760, 0
        %764 = vmatprep.subr.bf16.mxu0 0
        %765 = vmatpush1.bf16.msra.mxu0 %v741
        %766 = vmatprep.subr.bf16.mxu0 0
        %767 = vmatpush1.bf16.msra.mxu0 0
        %768 = vmatprep.subr.bf16.mxu0 0
        %769 = vmatpush1.bf16.msra.mxu0 0
        %770 = vmatprep.subr.bf16.mxu0 0
        %771 = vmatpush1.bf16.msra.mxu0 0
        %772 = vmatprep.subr.bf16.mxu0 0
        %773 = vmatpush1.bf16.msra.mxu0 0
        %774 = vmatprep.subr.bf16.mxu0 0
        %775 = vmatpush1.bf16.msra.mxu0 0
        %776 = vmatprep.subr.bf16.mxu0 0
        %777 = vmatpush1.bf16.msra.mxu0 0
        %778 = vmatprep.subr.bf16.mxu0 0
        %779 = vmatpush1.bf16.msra.mxu0 0
        %780 = vmatprep.subr.bf16.mxu0 0
        %781 = vmatpush1.bf16.msra.mxu0 0
        %782 = vmatprep.subr.bf16.mxu0 0
        %783 = vmatpush1.bf16.msra.mxu0 0
        %784 = vmatprep.subr.bf16.mxu0 0
        %785 = vmatpush1.bf16.msra.mxu0 0
        %786 = vmatprep.subr.bf16.mxu0 0
        %787 = vmatpush1.bf16.msra.mxu0 0
        %788 = vmatprep.subr.bf16.mxu0 0
        %789 = vmatpush1.bf16.msra.mxu0 0
        %790 = vmatprep.subr.bf16.mxu0 0
        %791 = vmatpush1.bf16.msra.mxu0 0
        %792 = vmatprep.subr.bf16.mxu0 0
        %793 = vmatpush1.bf16.msra.mxu0 0
        %794 = vmatprep.subr.bf16.mxu0 0
        %795 = vmatpush1.bf16.msra.mxu0 0
        %796 = vmatprep.mubr.bf16.mxu0 0
        %797 = vmatmul.mubr.bf16.gmra.mrb[0].mxu0 %v762
        %v798 = vpop.f32.mrb[0].mxu0
        %v799 = vadd.f32 %v749, %v798
        %v800 = vpop.f32.mrb[0].mxu0
        %v801 = vpop.f32.mrb[0].mxu0
        %v802 = vadd.f32 %v754, %v801
        %v803 = vpop.f32.mrb[0].mxu0
        %804 = vdwg.mxu0
        %v805 = vmax.f32 %v799, 0.0
        %v806 = vmax.f32 %v802, 0.0
        %v807 = vpack.c.bf16 %v806, %v805
        %v808 = vld [vmem:[%s8] sm:$0xf]
        %v809 = vld [vmem:[%s8 + $0x4] sm:$0xf]
        %v810 = vld [vmem:[%s9] sm:$0xff]
        %v811 = vld [vmem:[%s9 + $0x8] sm:$0xff]
        %813 = vset.pattern.permute.xlu0 0
        %814 = vperm.xlu0 %813, %v810
        %v815 = vpop.permute.xlu0 %814
        %818 = vset.pattern.permute.xlu0 0
        %819 = vperm.xlu0 %818, %v811
        %v820 = vpop.permute.xlu0 %819
        %v824 = vunpack.c.l.b16 %v808
        %v825 = vunpack.c.l.b16 %v809
        %v826 = vpack.c.b16 %v825, %v824
        %v828 = vsel %vm541, %v826, 0
        %830 = vmatprep.subr.bf16.mxu0 0
        %831 = vmatpush1.bf16.msra.mxu0 %v696
        %832 = vmatprep.subr.bf16.mxu0 0
        %833 = vmatpush1.bf16.msra.mxu0 0
        %834 = vmatprep.subr.bf16.mxu0 0
        %835 = vmatpush1.bf16.msra.mxu0 0
        %836 = vmatprep.subr.bf16.mxu0 0
        %837 = vmatpush1.bf16.msra.mxu0 0
        %838 = vmatprep.subr.bf16.mxu0 0
        %839 = vmatpush1.bf16.msra.mxu0 0
        %840 = vmatprep.subr.bf16.mxu0 0
        %841 = vmatpush1.bf16.msra.mxu0 0
        %842 = vmatprep.subr.bf16.mxu0 0
        %843 = vmatpush1.bf16.msra.mxu0 0
        %844 = vmatprep.subr.bf16.mxu0 0
        %845 = vmatpush1.bf16.msra.mxu0 0
        %846 = vmatprep.subr.bf16.mxu0 0
        %847 = vmatpush1.bf16.msra.mxu0 0
        %848 = vmatprep.subr.bf16.mxu0 0
        %849 = vmatpush1.bf16.msra.mxu0 0
        %850 = vmatprep.subr.bf16.mxu0 0
        %851 = vmatpush1.bf16.msra.mxu0 0
        %852 = vmatprep.subr.bf16.mxu0 0
        %853 = vmatpush1.bf16.msra.mxu0 0
        %854 = vmatprep.subr.bf16.mxu0 0
        %855 = vmatpush1.bf16.msra.mxu0 0
        %856 = vmatprep.subr.bf16.mxu0 0
        %857 = vmatpush1.bf16.msra.mxu0 0
        %858 = vmatprep.subr.bf16.mxu0 0
        %859 = vmatpush1.bf16.msra.mxu0 0
        %860 = vmatprep.subr.bf16.mxu0 0
        %861 = vmatpush1.bf16.msra.mxu0 0
        %862 = vmatprep.mubr.bf16.mxu0 0
        %863 = vmatmul.mubr.bf16.gmra.mrb[0].mxu0 %v828
        %v864 = vpop.f32.mrb[0].mxu0
        %v865 = vadd.f32 %v815, %v864
        %v866 = vpop.f32.mrb[0].mxu0
        %v867 = vpop.f32.mrb[0].mxu0
        %v868 = vadd.f32 %v820, %v867
        %v869 = vpop.f32.mrb[0].mxu0
        %870 = vdwg.mxu0
        %v871 = vmax.f32 %v865, 0.0
        %v872 = vmax.f32 %v868, 0.0
        %v873 = vpack.c.bf16 %v872, %v871
        %874 = vxpose.xlu0.c.b16.start [1/8] %v807, 128
        %875 = vxpose.xlu0.c.b16.cont [2/8] 0, 128
        %876 = vxpose.xlu0.c.b16.cont [3/8] 0, 128
        %877 = vxpose.xlu0.c.b16.cont [4/8] 0, 128
        %878 = vxpose.xlu0.c.b16.cont [5/8] 0, 128
        %879 = vxpose.xlu0.c.b16.cont [6/8] 0, 128
        %880 = vxpose.xlu0.c.b16.cont [7/8] 0, 128
        %881 = vxpose.xlu0.c.b16.end [8/8] 0, 128
        %v882 = vpop.trf.xlu0
        %v883 = vpop.trf.xlu0
        %v884 = vpop.trf.xlu0
        %v885 = vpop.trf.xlu0
        %v886 = vpop.trf.xlu0
        %v887 = vpop.trf.xlu0
        %v888 = vpop.trf.xlu0
        %v889 = vpop.trf.xlu0
        %v891 = vsel %vm620, %v882, 0
        %893 = vmatprep.subr.bf16.mxu0 %v672
        %894 = vmatpush1.bf16.msra.mxu0 %v671
        %895 = vmatprep.subr.bf16.mxu0 0
        %896 = vmatpush1.bf16.msra.mxu0 0
        %897 = vmatprep.subr.bf16.mxu0 0
        %898 = vmatpush1.bf16.msra.mxu0 0
        %899 = vmatprep.subr.bf16.mxu0 0
        %900 = vmatpush1.bf16.msra.mxu0 0
        %901 = vmatprep.subr.bf16.mxu0 0
        %902 = vmatpush1.bf16.msra.mxu0 0
        %903 = vmatprep.subr.bf16.mxu0 0
        %904 = vmatpush1.bf16.msra.mxu0 0
        %905 = vmatprep.subr.bf16.mxu0 0
        %906 = vmatpush1.bf16.msra.mxu0 0
        %907 = vmatprep.subr.bf16.mxu0 0
        %908 = vmatpush1.bf16.msra.mxu0 0
        %909 = vmatprep.subr.bf16.mxu0 0
        %910 = vmatpush1.bf16.msra.mxu0 0
        %911 = vmatprep.subr.bf16.mxu0 0
        %912 = vmatpush1.bf16.msra.mxu0 0
        %913 = vmatprep.subr.bf16.mxu0 0
        %914 = vmatpush1.bf16.msra.mxu0 0
        %915 = vmatprep.subr.bf16.mxu0 0
        %916 = vmatpush1.bf16.msra.mxu0 0
        %917 = vmatprep.subr.bf16.mxu0 0
        %918 = vmatpush1.bf16.msra.mxu0 0
        %919 = vmatprep.subr.bf16.mxu0 0
        %920 = vmatpush1.bf16.msra.mxu0 0
        %921 = vmatprep.subr.bf16.mxu0 0
        %922 = vmatpush1.bf16.msra.mxu0 0
        %923 = vmatprep.subr.bf16.mxu0 0
        %924 = vmatpush1.bf16.msra.mxu0 0
        %925 = vmatprep.mubr.bf16.mxu0 0
        %926 = vmatmul.mubr.bf16.gmra.mrb[0].mxu0 %v891
        %v927 = vpop.f32.mrb[0].mxu0
        %v928 = vadd.f32 0.0, %v927
        %v929 = vpop.f32.mrb[0].mxu0
        %v930 = vadd.f32 0.0, %v929
        %v931 = vpop.f32.mrb[0].mxu0
        %v932 = vpop.f32.mrb[0].mxu0
        %933 = vdwg.mxu0
        %v934 = vsel %vm545, %v928, -inf
        %v935 = vrot.slane %v934, 4
        %v936 = vmax.f32 %v934, %v935
        %v937 = vrot.slane %v936, 2
        %v938 = vmax.f32 %v936, %v937
        %v939 = vrot.slane %v938, 1
        %v940 = vmax.f32 %v938, %v939
        %v941 = vsel %vm545, %v930, -inf
        %v942 = vrot.slane %v941, 4
        %v943 = vmax.f32 %v941, %v942
        %v944 = vrot.slane %v943, 2
        %v945 = vmax.f32 %v943, %v944
        %v946 = vrot.slane %v945, 1
        %v947 = vmax.f32 %v945, %v946
        %v948 = vsub.f32 %v928, %v940
        %v949 = vsub.f32 %v930, %v947
        %v950 = vmul.f32 %v948, 1.442695
        %v951 = vpow.pop %v950
        %v952 = vmul.f32 %v949, 1.442695
        %v953 = vpow.pop %v952
        %v954 = vsel %vm545, %v951, 0.0
        %v955 = vrot.slane %v954, 4
        %v956 = vadd.f32 %v954, %v955
        %v957 = vrot.slane %v956, 2
        %v958 = vadd.f32 %v956, %v957
        %v959 = vrot.slane %v958, 1
        %v960 = vadd.f32 %v958, %v959
        %v961 = vsel %vm545, %v953, 0.0
        %v962 = vrot.slane %v961, 4
        %v963 = vadd.f32 %v961, %v962
        %v964 = vrot.slane %v963, 2
        %v965 = vadd.f32 %v963, %v964
        %v966 = vrot.slane %v965, 1
        %v967 = vadd.f32 %v965, %v966
        %v968 = vrcp.pop %v960
        %v969 = vrcp.pop %v967
        %v970 = vmul.f32 %v951, %v968
        %v971 = vmul.f32 %v953, %v969
        %v972 = vpack.c.bf16 %v970, %v970
        %v973 = vpack.c.bf16 %v971, %v971
        %vm974 = vcmask 31744
        %v976 = vsel %vm974, %v873, 0
        %vm978 = vcmask 1041408
        %v980 = vsel %vm978, %v972, 0
        %v983 = vsel %vm978, %v973, 0
        %985 = vmatprep.subr.bf16.mxu0 %v983
        %986 = vmatpush1.bf16.msra.mxu0 %v980
        %987 = vmatprep.subr.bf16.mxu0 0
        %988 = vmatpush1.bf16.msra.mxu0 0
        %989 = vmatprep.subr.bf16.mxu0 0
        %990 = vmatpush1.bf16.msra.mxu0 0
        %991 = vmatprep.subr.bf16.mxu0 0
        %992 = vmatpush1.bf16.msra.mxu0 0
        %993 = vmatprep.subr.bf16.mxu0 0
        %994 = vmatpush1.bf16.msra.mxu0 0
        %995 = vmatprep.subr.bf16.mxu0 0
        %996 = vmatpush1.bf16.msra.mxu0 0
        %997 = vmatprep.subr.bf16.mxu0 0
        %998 = vmatpush1.bf16.msra.mxu0 0
        %999 = vmatprep.subr.bf16.mxu0 0
        %1000 = vmatpush1.bf16.msra.mxu0 0
        %1001 = vmatprep.subr.bf16.mxu0 0
        %1002 = vmatpush1.bf16.msra.mxu0 0
        %1003 = vmatprep.subr.bf16.mxu0 0
        %1004 = vmatpush1.bf16.msra.mxu0 0
        %1005 = vmatprep.subr.bf16.mxu0 0
        %1006 = vmatpush1.bf16.msra.mxu0 0
        %1007 = vmatprep.subr.bf16.mxu0 0
        %1008 = vmatpush1.bf16.msra.mxu0 0
        %1009 = vmatprep.subr.bf16.mxu0 0
        %1010 = vmatpush1.bf16.msra.mxu0 0
        %1011 = vmatprep.subr.bf16.mxu0 0
        %1012 = vmatpush1.bf16.msra.mxu0 0
        %1013 = vmatprep.subr.bf16.mxu0 0
        %1014 = vmatpush1.bf16.msra.mxu0 0
        %1015 = vmatprep.subr.bf16.mxu0 0
        %1016 = vmatpush1.bf16.msra.mxu0 0
        %1017 = vmatprep.mubr.bf16.mxu0 0
        %1018 = vmatmul.mubr.bf16.gmra.mrb[0].mxu0 %v976
        %v1019 = vpop.f32.mrb[0].mxu0
        %v1020 = vadd.f32 0.0, %v1019
        %v1021 = vpop.f32.mrb[0].mxu0
        %v1022 = vadd.f32 0.0, %v1021
        %v1023 = vpop.f32.mrb[0].mxu0
        %v1024 = vadd.f32 0.0, %v1023
        %v1025 = vpop.f32.mrb[0].mxu0
        %v1026 = vadd.f32 0.0, %v1025
        %1027 = vdwg.mxu0
        %v1028 = vld [vmem:[%s10] sm:$0xf]
        %v1029 = vpack.c.bf16 %v1024, %v1020
        %v1030 = vpack.c.bf16 %v1026, %v1022
        %v1031 = vld [vmem:[%s11] sm:$0xff]
        %1033 = vset.pattern.permute.xlu0 0
        %1034 = vperm.xlu0 %1033, %v1031
        %v1035 = vpop.permute.xlu0 %1034
        %v1038 = vsel %vm620, %v1028, 0
        %1040 = vmatprep.subr.bf16.mxu0 %v1030
        %1041 = vmatpush1.bf16.msra.mxu0 %v1029
        %1042 = vmatprep.subr.bf16.mxu0 0
        %1043 = vmatpush1.bf16.msra.mxu0 0
        %1044 = vmatprep.subr.bf16.mxu0 0
        %1045 = vmatpush1.bf16.msra.mxu0 0
        %1046 = vmatprep.subr.bf16.mxu0 0
        %1047 = vmatpush1.bf16.msra.mxu0 0
        %1048 = vmatprep.subr.bf16.mxu0 0
        %1049 = vmatpush1.bf16.msra.mxu0 0
        %1050 = vmatprep.subr.bf16.mxu0 0
        %1051 = vmatpush1.bf16.msra.mxu0 0
        %1052 = vmatprep.subr.bf16.mxu0 0
        %1053 = vmatpush1.bf16.msra.mxu0 0
        %1054 = vmatprep.subr.bf16.mxu0 0
        %1055 = vmatpush1.bf16.msra.mxu0 0
        %1056 = vmatprep.subr.bf16.mxu0 0
        %1057 = vmatpush1.bf16.msra.mxu0 0
        %1058 = vmatprep.subr.bf16.mxu0 0
        %1059 = vmatpush1.bf16.msra.mxu0 0
        %1060 = vmatprep.subr.bf16.mxu0 0
        %1061 = vmatpush1.bf16.msra.mxu0 0
        %1062 = vmatprep.subr.bf16.mxu0 0
        %1063 = vmatpush1.bf16.msra.mxu0 0
        %1064 = vmatprep.subr.bf16.mxu0 0
        %1065 = vmatpush1.bf16.msra.mxu0 0
        %1066 = vmatprep.subr.bf16.mxu0 0
        %1067 = vmatpush1.bf16.msra.mxu0 0
        %1068 = vmatprep.subr.bf16.mxu0 0
        %1069 = vmatpush1.bf16.msra.mxu0 0
        %1070 = vmatprep.subr.bf16.mxu0 0
        %1071 = vmatpush1.bf16.msra.mxu0 0
        %1072 = vmatprep.mubr.bf16.mxu0 0
        %1073 = vmatmul.mubr.bf16.gmra.mrb[0].mxu0 %v1038
        %v1074 = vpop.f32.mrb[0].mxu0
        %v1075 = vadd.f32 %v1035, %v1074
        %v1076 = vpop.f32.mrb[0].mxu0
        %v1077 = vadd.f32 %v1035, %v1076
        %v1078 = vpop.f32.mrb[0].mxu0
        %v1079 = vpop.f32.mrb[0].mxu0
        %1080 = vdwg.mxu0
        %v1081 = vmax.f32 %v1075, 0.0
        %v1082 = vmax.f32 %v1077, 0.0
        %1083 = vst [vmem:[%s498] sm:$0xff] %v1081
        %1084 = vst [vmem:[%s498 + $0x8] sm:$0xff] %v1082
        %s1085 = sand.u32 %s356, 1
        %s1086 = scalar_lea.sflag [#allocation3], %s1085
        %s1087 = sand.u32 %s356, 1
        %s1088 = smul.addr %s1087, 16
        %s1089 = scalar_lea.vmem [#allocation2], %s1088
        // Predicated region
        $region77: #{tpu_custom_call.1} parent=75 // pred_check
          %p1090 = pneg %p366
        $region78: #{tpu_custom_call.1} parent=75 // pred_check_branch
          %1092 = sbr.rel (%p1090) target = $region80
        $region79: #{tpu_custom_call.1} parent=75 // pred_region
          %s1093 = smul.u32 2, %s33
          %s1095 = ssub.s32 256, 256
          %1096 = vsyncadd %s1086, %s1095
          %s1097 = smul.addr %s32, 2
          %s1098 = sadd.s32 %s1093, %s1097
          %s1099 = smul.addr %s1098, 128
          %s1100 = scalar_lea.hbm %s14, %s1099
          %s1102 = sshll.u32 %s1089, 4
          %s1103 = int_to_ptr.vmem [resolvable:$true] %s1102
          %1105 = dma.vmem_to_hbm [thread:$0]  %s1103, 256, %s1100, %s1086
        $region80: #{tpu_custom_call.1} parent=75 // pred_fallthru
          _
      $region76: #{tpu_custom_call.1} parent=5 // pred_fallthru
        _
      %p1106 = scmp.le.s32.totalorder 2, %s23
      // Predicated region
      $region81: #{tpu_custom_call.1} parent=5 // pred_check
        %p1107 = pneg %p1106
      $region82: #{tpu_custom_call.1} parent=5 // pred_check_branch
        %1109 = sbr.rel (%p1107) target = $region84
      $region83: #{tpu_custom_call.1} parent=5 // pred_region
        %s1110 = ssub.s32 %s23, 2
        // Predicated region
        $region85: #{tpu_custom_call.1} parent=83 // pred_check
          %p1111 = pneg %p372
        $region86: #{tpu_custom_call.1} parent=83 // pred_check_branch
          %1113 = sbr.rel (%p1111) target = $region88
        $region87: #{tpu_custom_call.1} parent=83 // pred_region
          %s1114 = sand.u32 %s357, 1
          %s1115 = scalar_lea.sflag [#allocation3], %s1114
          %s1116 = sand.u32 %s357, 1
          %s1117 = smul.addr %s1116, 16
          %s1118 = scalar_lea.vmem [#allocation2], %s1117
          %1119 = dma.done %s1115, 256
        $region88: #{tpu_custom_call.1} parent=83 // pred_fallthru
          _
      $region84: #{tpu_custom_call.1} parent=5 // pred_fallthru
        _
    $region6: #{tpu_custom_call.1} parent=1 // loop_footer
      %s27 = sadd.s32 1, %s23
    $region7: #{tpu_custom_call.1} parent=1 // loop_footer_branch
      %22 = sbr.rel target = $region3
    $region8: #{tpu_custom_call.1} parent=1 // loop_exit
      _
    %1120 = vsyncpa [#allocation3], 1
    %s1121 = scalar_lea.sflag [#allocation3], 1
    %1122 = vsyncpa %s1121, 1

</llo_original>
